<compile_context>
chip_gen: v6e
topology: v6e:2x2x1
jax: 0.10.0
libtpu: 0.0.40
codegen_flags: <defaults>
</compile_context>

<pallas_src>
import math

import jax
import jax.numpy as jnp
from jax.experimental import pallas as pl
from jax.experimental.pallas import tpu as pltpu

_BLOCK_BUDGET_BYTES = 2 * 1024 * 1024   # target bytes per block (review: 2-4 MiB)
_VMEM_LIMIT_FLOOR = 32 * 1024 * 1024    # never request below any generation's default
_VMEM_LIMIT_CAP = 40 * 1024 * 1024      # stay well inside v7x's 64 MiB physical VMEM
_MAX_UNROLL = 32                        # cap on unrolled per-block p/m slices


def _max_tile(dim: int, unit: int, cap: int) -> int:
    """Largest legal tile for `dim` (full dim, else a multiple of `unit`) <= cap."""
    if dim <= cap:
        return dim
    t = (cap // unit) * unit
    if t <= 0:
        return min(dim, unit)
    return t


def _grow_tiles(dims, units, order, budget_elems, caps):
    """Greedy tile allocation: start at per-dim minimum legal tiles and grow dims
    in priority `order` to fill `budget_elems` (soft), honoring per-dim `caps`."""
    tiles = [min(d, u) for d, u in zip(dims, units)]
    for idx in order:
        others = 1
        for j, t in enumerate(tiles):
            if j != idx:
                others *= t
        cap = max(1, budget_elems // max(1, others))
        if caps[idx] is not None:
            cap = min(cap, caps[idx])
        tiles[idx] = _max_tile(dims[idx], units[idx], cap)
    return tiles


# --------------------------------------------------------------------------- #
# Kernels (block-local permutes; the block-position swap is in the index_maps)
# --------------------------------------------------------------------------- #
def _swap_majors_4d_kernel(x_ref, o_ref):
    # (t_p, t_a, t_b, t_t) -> (t_p, t_b, t_a, t_t); lane dim (t_t) untouched.
    for p in range(x_ref.shape[0]):
        o_ref[p] = jnp.transpose(x_ref[p], (1, 0, 2))


def _swap_majors_5d_kernel(x_ref, o_ref):
    # (t_p, t_a, t_m, t_b, t_t) -> (t_p, t_b, t_m, t_a, t_t); lane untouched.
    t_p, _, t_m, _, _ = x_ref.shape
    for p in range(t_p):
        xp = x_ref[p]                                            # (a, m, b, t)
        pieces = [jnp.transpose(xp[:, m], (1, 0, 2))[:, None]    # (b, 1, a, t)
                  for m in range(t_m)]
        o_ref[p] = jnp.concatenate(pieces, axis=1)               # (b, m, a, t)


def _transpose_3d_kernel(x_ref, o_ref):
    # (t_p, t_a, t_b) -> (t_p, t_b, t_a); lane dim participates (2-D transpose).
    for p in range(x_ref.shape[0]):
        o_ref[p] = x_ref[p].T


def _transpose_4d_kernel(x_ref, o_ref):
    # (t_p, t_a, t_m, t_b) -> (t_p, t_b, t_m, t_a); built from proven 2-D/major
    # permutes (avoids an unsupported general 3-D lane-crossing permute).
    t_p, _, t_m, _ = x_ref.shape
    for p in range(t_p):
        xp = x_ref[p]                                   # (a, m, b)
        v1 = jnp.transpose(xp, (1, 0, 2))               # (m, a, b)
        v2 = jnp.concatenate([v1[m].T[None] for m in range(t_m)], axis=0)  # (m, b, a)
        o_ref[p] = jnp.transpose(v2, (1, 0, 2))         # (b, m, a)


# --------------------------------------------------------------------------- #
# Wrapper
# --------------------------------------------------------------------------- #
def pallas_transpose(x: jax.Array, dim0: int, dim1: int) -> jax.Array:
    """torch.Tensor.transpose(dim0, dim1) as a Pallas TPU kernel."""
    ndim = x.ndim
    dim0 %= ndim
    dim1 %= ndim
    if dim0 == dim1:                       # identity: no kernel launch
        return x
    d0, d1 = sorted((dim0, dim1))

    shape = x.shape
    out_shape = list(shape)
    out_shape[dim0], out_shape[dim1] = out_shape[dim1], out_shape[dim0]
    out_shape = tuple(out_shape)

    # Canonical folded view (P, A, M, B, T); swap acts on A <-> B.
    P = math.prod(shape[:d0])
    A = shape[d0]
    M = math.prod(shape[d0 + 1:d1])
    B = shape[d1]
    T = math.prod(shape[d1 + 1:])

    # Degenerate swaps are pure metadata reshapes: no kernel, no HBM traffic.
    if x.size == 0 or (A == 1 and B == 1) or ((A == 1 or B == 1) and M == 1):
        return x.reshape(out_shape)

    itemsize = jnp.dtype(x.dtype).itemsize
    sub = max(8, 32 // itemsize)                       # sublane packing (8/16/32)
    budget = max(1, _BLOCK_BUDGET_BYTES // itemsize)   # target elements per block

    if T > 1:
        # ---- Case A: the lane (last) axis is untouched by the swap. ---------
        # TODO(synk): for T << 128, a packed variant assembling 128-lane store
        # rows from ceil(128/T) consecutive b-rows would lift vst efficiency.
        if M == 1:
            x_v = x.reshape(P, A, B, T)
            dims, units = (P, A, B, T), (1, sub, sub, 128)
            caps = (_MAX_UNROLL, None, None, None)
            t_p, t_a, t_b, t_t = _grow_tiles(dims, units, (3, 2, 1, 0), budget, caps)
            grid = (pl.cdiv(P, t_p), pl.cdiv(A, t_a), pl.cdiv(B, t_b), pl.cdiv(T, t_t))
            in_spec = pl.BlockSpec((t_p, t_a, t_b, t_t),
                                   lambda ip, ia, ib, it: (ip, ia, ib, it))
            out_spec = pl.BlockSpec((t_p, t_b, t_a, t_t),
                                    lambda ip, ia, ib, it: (ip, ib, ia, it))
            kernel = _swap_majors_4d_kernel
            out_view = (P, B, A, T)
            block_elems = t_p * t_a * t_b * t_t
        else:
            x_v = x.reshape(P, A, M, B, T)
            dims, units = (P, A, M, B, T), (1, sub, 1, sub, 128)
            caps = (None, None, _MAX_UNROLL, None, None)
            _, t_a, t_m, t_b, t_t = _grow_tiles(dims, units, (4, 3, 1, 2), budget, caps)
            p_cap = min(max(1, budget // (t_a * t_m * t_b * t_t)),
                        max(1, _MAX_UNROLL // t_m))
            t_p = _max_tile(P, 1, p_cap)
            n_m = pl.cdiv(M, t_m)
            grid = (pl.cdiv(P, t_p) * n_m, pl.cdiv(A, t_a),
                    pl.cdiv(B, t_b), pl.cdiv(T, t_t))
            in_spec = pl.BlockSpec(
                (t_p, t_a, t_m, t_b, t_t),
                lambda g, ia, ib, it: (g // n_m, ia, g % n_m, ib, it))
            out_spec = pl.BlockSpec(
                (t_p, t_b, t_m, t_a, t_t),
                lambda g, ia, ib, it: (g // n_m, ib, g % n_m, ia, it))
            kernel = _swap_majors_5d_kernel
            out_view = (P, B, M, A, T)
            block_elems = t_p * t_a * t_m * t_b * t_t
    else:
        # ---- Case B: the lane (last) axis participates in the swap. ---------
        if M == 1:
            x_v = x.reshape(P, A, B)
            # Both t_a and t_b must be lane dense (mult of 128) or full dims.
            dims, units = (P, A, B), (1, 128, 128)
            caps = (_MAX_UNROLL, None, None)
            # Input-contiguous dim (B) first, then A, then P.
            t_p, t_a, t_b = _grow_tiles(dims, units, (2, 1, 0), budget, caps)
            grid = (pl.cdiv(P, t_p), pl.cdiv(A, t_a), pl.cdiv(B, t_b))
            in_spec = pl.BlockSpec((t_p, t_a, t_b), lambda ip, ia, ib: (ip, ia, ib))
            out_spec = pl.BlockSpec((t_p, t_b, t_a), lambda ip, ia, ib: (ip, ib, ia))
            kernel = _transpose_3d_kernel
            out_view = (P, B, A)
            block_elems = t_p * t_a * t_b
        else:
            x_v = x.reshape(P, A, M, B)
            # In last-two = (t_m, t_b), out last-two = (t_m, t_a):
            # t_m multiple of sublane packing (or full M), t_a/t_b lane dense.
            dims, units = (P, A, M, B), (1, 128, sub, 128)
            caps = (None, None, max(sub, _MAX_UNROLL), None)
            _, t_a, t_m, t_b = _grow_tiles(dims, units, (3, 1, 2), budget, caps)
            p_cap = min(max(1, budget // (t_a * t_m * t_b)),
                        max(1, _MAX_UNROLL // t_m))
            t_p = _max_tile(P, 1, p_cap)
            n_m = pl.cdiv(M, t_m)
            grid = (pl.cdiv(P, t_p) * n_m, pl.cdiv(A, t_a), pl.cdiv(B, t_b))
            in_spec = pl.BlockSpec(
                (t_p, t_a, t_m, t_b),
                lambda g, ia, ib: (g // n_m, ia, g % n_m, ib))
            out_spec = pl.BlockSpec(
                (t_p, t_b, t_m, t_a),
                lambda g, ia, ib: (g // n_m, ib, g % n_m, ia))
            kernel = _transpose_4d_kernel
            out_view = (P, B, M, A)
            block_elems = t_p * t_a * t_m * t_b

    block_bytes = block_elems * itemsize
    vmem_limit = int(min(_VMEM_LIMIT_CAP,
                         max(_VMEM_LIMIT_FLOOR, 8 * block_bytes + (2 << 20))))
    # Pure-bandwidth kernel: 1x read + 1x write of the whole tensor.
    cost = pl.CostEstimate(flops=0, transcendentals=0,
                           bytes_accessed=2 * x.size * itemsize)

    grid_spec = pltpu.PrefetchScalarGridSpec(
        num_scalar_prefetch=0,
        grid=grid,
        in_specs=[in_spec],
        out_specs=out_spec,
    )
    # Note: pl.Buffered(3) on in_spec could help for irreducibly tiny blocks,
    # but needs a hardware sweep before committing, so it is not enabled here.
    y = pl.pallas_call(
        kernel,
        out_shape=jax.ShapeDtypeStruct(out_view, x.dtype),
        grid_spec=grid_spec,
        compiler_params=pltpu.CompilerParams(
            dimension_semantics=("parallel",) * len(grid),
            vmem_limit_bytes=vmem_limit),
        cost_estimate=cost,
    )(x_v)
    # Folded-view reshapes are row-major metadata only (free).
    return y.reshape(out_shape)


class Transpose:
    """Pallas-backed equivalent of the PyTorch Transpose(nn.Module)."""

    def __init__(self, dim0: int, dim1: int):
        self.dim0 = dim0
        self.dim1 = dim1

    def __call__(self, x: jax.Array) -> jax.Array:
        return pallas_transpose(x, self.dim0, self.dim1)


if __name__ == "__main__":
    key = jax.random.PRNGKey(0)
    k4, k3 = jax.random.split(key)

    # NCHW activation (VAE block), and a (B, C, H*W) activation as used for the
    # module's canonical Transpose(1, 2) around attention.
    x4 = jax.random.normal(k4, (2, 4, 16, 16), dtype=jnp.float32)
    x3 = jax.random.normal(k3, (2, 8, 64), dtype=jnp.float32)

    cases = [
        (x4, 1, 2),   # Case A, M == 1  (lane axis untouched)
        (x4, 2, 3),   # Case B, M == 1  (lane axis swapped)
        (x3, 1, 2),   # Case B, M == 1  (3-D attention-reshape pattern)
        (x4, 0, 2),   # Case A, M > 1
        (x4, 1, 3),   # Case B, M > 1
        (x4, 2, 2),   # identity fast path
    ]
    for xv, a, b in cases:
        got = jax.block_until_ready(Transpose(a, b)(xv))
        want = jnp.swapaxes(xv, a, b)
        assert got.shape == want.shape, (a, b, got.shape, want.shape)
        assert jnp.array_equal(got, want), f"mismatch for transpose({a}, {b})"

    print("KERNEL_OK")
</pallas_src>

<mosaic_0001>
module attributes {stable_mosaic.version = 11 : i64} {
  func.func @_swap_majors_4d_kernel(%arg0: i32, %arg1: i32, %arg2: i32, %arg3: i32, %arg4: memref<2x4x16x16xf32, #tpu.memory_space<vmem>>, %arg5: memref<2x16x4x16xf32, #tpu.memory_space<vmem>>) attributes {dimension_semantics = [#tpu.dimension_semantics<parallel>, #tpu.dimension_semantics<parallel>, #tpu.dimension_semantics<parallel>, #tpu.dimension_semantics<parallel>], iteration_bounds = array<i64: 1, 1, 1, 1>, scalar_prefetch = 0 : i64, scratch_operands = 0 : i64, tpu.core_type = #tpu.core_type<tc>, window_params = [{transform_indices = @transform_0, window_bounds = array<i64: 2, 4, 16, 16>}, {transform_indices = @transform_1, window_bounds = array<i64: 2, 16, 4, 16>}]} {
    %c0 = arith.constant 0 : index
    %c0_0 = arith.constant 0 : index
    %c0_1 = arith.constant 0 : index
    %c0_2 = arith.constant 0 : index
    %0 = vector.load %arg4[%c0, %c0_0, %c0_1, %c0_2] : memref<2x4x16x16xf32, #tpu.memory_space<vmem>>, vector<1x4x16x16xf32>
    %1 = vector.shape_cast %0 : vector<1x4x16x16xf32> to vector<4x16x16xf32>
    %2 = tpu.transpose %1, [1, 0, 2] : vector<4x16x16xf32> -> vector<16x4x16xf32>
    %c0_3 = arith.constant 0 : index
    %c0_4 = arith.constant 0 : index
    %c0_5 = arith.constant 0 : index
    %c0_6 = arith.constant 0 : index
    %3 = vector.load %arg5[%c0_3, %c0_4, %c0_5, %c0_6] : memref<2x16x4x16xf32, #tpu.memory_space<vmem>>, vector<1x16x4x16xf32>
    %4 = vector.shape_cast %3 : vector<1x16x4x16xf32> to vector<16x4x16xf32>
    %5 = vector.shape_cast %2 : vector<16x4x16xf32> to vector<1x16x4x16xf32>
    tpu.vector_store %arg5[%c0_3, %c0_4, %c0_5, %c0_6], %5 {strides = array<i32>} : memref<2x16x4x16xf32, #tpu.memory_space<vmem>>, vector<1x16x4x16xf32>,
    %c1 = arith.constant 1 : index
    %c0_7 = arith.constant 0 : index
    %c0_8 = arith.constant 0 : index
    %c0_9 = arith.constant 0 : index
    %6 = vector.load %arg4[%c1, %c0_7, %c0_8, %c0_9] : memref<2x4x16x16xf32, #tpu.memory_space<vmem>>, vector<1x4x16x16xf32>
    %7 = vector.shape_cast %6 : vector<1x4x16x16xf32> to vector<4x16x16xf32>
    %8 = tpu.transpose %7, [1, 0, 2] : vector<4x16x16xf32> -> vector<16x4x16xf32>
    %c1_10 = arith.constant 1 : index
    %c0_11 = arith.constant 0 : index
    %c0_12 = arith.constant 0 : index
    %c0_13 = arith.constant 0 : index
    %9 = vector.load %arg5[%c1_10, %c0_11, %c0_12, %c0_13] : memref<2x16x4x16xf32, #tpu.memory_space<vmem>>, vector<1x16x4x16xf32>
    %10 = vector.shape_cast %9 : vector<1x16x4x16xf32> to vector<16x4x16xf32>
    %11 = vector.shape_cast %8 : vector<16x4x16xf32> to vector<1x16x4x16xf32>
    tpu.vector_store %arg5[%c1_10, %c0_11, %c0_12, %c0_13], %11 {strides = array<i32>} : memref<2x16x4x16xf32, #tpu.memory_space<vmem>>, vector<1x16x4x16xf32>,
    return
  }
  func.func @transform_0(%arg0: i32, %arg1: i32, %arg2: i32, %arg3: i32) -> (i32, i32, i32, i32) {
    %c0_i32 = arith.constant 0 : i32
    return %arg0, %arg1, %arg2, %arg3 : i32, i32, i32, i32
  }
  func.func @transform_1(%arg0: i32, %arg1: i32, %arg2: i32, %arg3: i32) -> (i32, i32, i32, i32) {
    %c0_i32 = arith.constant 0 : i32
    return %arg0, %arg2, %arg1, %arg3 : i32, i32, i32, i32
  }
}

</mosaic_0001>

<llo_original>
// kernel: tpu_custom_call.1
$region0: #{tpu_custom_call.1}
  #allocation0 [shape = 'u32[]', space=smem, size = 0x4, offset = 0x4, fixed_abs, tag = 'smem constant byte address 0x4 - core index']
  #allocation1 [shape = 'u32[144,128]{1,0:T(1,128)}', space=vmem, size = 0x12000, scoped, tag = 'internal scratch']
  %s0 = inlined_call_operand.hbm [shape: f32[2,4,16,16], index: 0, kind: input, shape index: {}]
  %s1 = inlined_call_operand.hbm [shape: f32[2,16,4,16], index: 1, kind: output, shape index: {}]
  %s2 = sld [smem:[#allocation0]]
  $region18: #{tpu_custom_call.1} parent=0
    _
  %s4 = ssub.s32 1, %s2
  %s5 = scalar_select 0, %s4, %s2
  $region1: #{tpu_custom_call.1} parent=0
    #allocation2 [shape = 'u8[65536]{0}', space=vmem, size = 0x10000, scoped, tag = 'input window, operand 0, single buffered']
    #allocation3 [shape = 's32[1]{0}', space=sflag, size = 0x4, scoped, tag = 'scoped memory for tpu_custom_call.1']
    #allocation4 [shape = 's32[1]{0}', space=sflag, size = 0x4, scoped, tag = 'scoped memory for tpu_custom_call.1']
    #allocation5 [shape = 'u8[65536]{0}', space=vmem, size = 0x10000, scoped, tag = 'output window, operand 0, single buffered']
    %6 = vsyncpa [#allocation3], 0
    %7 = vsyncpa [#allocation4], 0
    // Predicated region
    $region2: #{tpu_custom_call.1} parent=1 // pred_check
      _
    $region3: #{tpu_custom_call.1} parent=1 // pred_check_branch
      %9 = sbr.rel (0) target = $region5
    $region4: #{tpu_custom_call.1} parent=1 // pred_region
      %s11 = ssub.s32 2048, 2048
      %12 = vsyncadd [#allocation3], %s11
      %s13 = sshll.u32 [#allocation2], 4
      %s14 = int_to_ptr.vmem [resolvable:$true] %s13
      %19 = dma.hbm_to_vmem [thread:$0]  %s0, 2048, %s14, [#allocation3], 128, 128, 8
    $region5: #{tpu_custom_call.1} parent=1 // pred_fallthru
      _
    // Predicated region
    $region6: #{tpu_custom_call.1} parent=1 // pred_check
      _
    $region7: #{tpu_custom_call.1} parent=1 // pred_check_branch
      %21 = sbr.rel (0) target = $region9
    $region8: #{tpu_custom_call.1} parent=1 // pred_region
      %22 = dma.done [#allocation3], 2048
    $region9: #{tpu_custom_call.1} parent=1 // pred_fallthru
      _
    %v23 = vld [vmem:[#allocation2] sm:$0xff]
    %v24 = vld [vmem:[#allocation2 + $0x8] sm:$0xff]
    %v25 = vld [vmem:[#allocation2 + $0x10] sm:$0xff]
    %v26 = vld [vmem:[#allocation2 + $0x18] sm:$0xff]
    %v27 = vld [vmem:[#allocation2 + $0x20] sm:$0xff]
    %v28 = vld [vmem:[#allocation2 + $0x28] sm:$0xff]
    %v29 = vld [vmem:[#allocation2 + $0x30] sm:$0xff]
    %v30 = vld [vmem:[#allocation2 + $0x38] sm:$0xff]
    %v31 = vcombine.low %v23, %v27
    %v32 = vcombine.high %v23, %v27
    %v34 = vunpack.c.l.s4 1983009808
    %v35 = vunpack.c.0.s8 %v34
    %v36 = vlaneseq
    %v37 = vshrl.u32 %v36, 7
    %v38 = vsub.s32 %v35, %v37
    %v39 = vrot.slane %v31, %v38
    %v41 = vunpack.c.l.s4 1983009808
    %v42 = vunpack.c.0.s8 %v41
    %v43 = vlaneseq
    %v44 = vshrl.u32 %v43, 7
    %v45 = vsub.s32 %v42, %v44
    %v46 = vrot.slane %v32, %v45
    %v47 = vcombine.low %v25, %v29
    %v48 = vcombine.high %v25, %v29
    %v50 = vunpack.c.l.s4 1983009808
    %v51 = vunpack.c.0.s8 %v50
    %v52 = vlaneseq
    %v53 = vshrl.u32 %v52, 7
    %v54 = vsub.s32 %v51, %v53
    %v55 = vrot.slane %v47, %v54
    %v57 = vunpack.c.l.s4 1983009808
    %v58 = vunpack.c.0.s8 %v57
    %v59 = vlaneseq
    %v60 = vshrl.u32 %v59, 7
    %v61 = vsub.s32 %v58, %v60
    %v62 = vrot.slane %v48, %v61
    %v63 = vcombine.low %v39, %v55
    %v64 = vcombine.high %v39, %v55
    %v66 = vunpack.c.l.s4 1934713408
    %v67 = vunpack.c.0.s8 %v66
    %v68 = vlaneseq
    %v69 = vshrl.u32 %v68, 7
    %v70 = vsub.s32 %v67, %v69
    %v71 = vrot.slane %v63, %v70
    %v73 = vunpack.c.l.s4 1934713408
    %v74 = vunpack.c.0.s8 %v73
    %v75 = vlaneseq
    %v76 = vshrl.u32 %v75, 7
    %v77 = vsub.s32 %v74, %v76
    %v78 = vrot.slane %v64, %v77
    %v79 = vcombine.low %v46, %v62
    %v80 = vcombine.high %v46, %v62
    %v82 = vunpack.c.l.s4 1934713408
    %v83 = vunpack.c.0.s8 %v82
    %v84 = vlaneseq
    %v85 = vshrl.u32 %v84, 7
    %v86 = vsub.s32 %v83, %v85
    %v87 = vrot.slane %v79, %v86
    %v89 = vunpack.c.l.s4 1934713408
    %v90 = vunpack.c.0.s8 %v89
    %v91 = vlaneseq
    %v92 = vshrl.u32 %v91, 7
    %v93 = vsub.s32 %v90, %v92
    %v94 = vrot.slane %v80, %v93
    %v95 = vcombine.high %v71, 0.0
    %v96 = vcombine.high %v78, 0.0
    %v97 = vcombine.high %v87, 0.0
    %v98 = vcombine.high %v94, 0.0
    %v99 = vcombine.low %v24, %v28
    %v100 = vcombine.high %v24, %v28
    %v102 = vunpack.c.l.s4 1983009808
    %v103 = vunpack.c.0.s8 %v102
    %v104 = vlaneseq
    %v105 = vshrl.u32 %v104, 7
    %v106 = vsub.s32 %v103, %v105
    %v107 = vrot.slane %v99, %v106
    %v109 = vunpack.c.l.s4 1983009808
    %v110 = vunpack.c.0.s8 %v109
    %v111 = vlaneseq
    %v112 = vshrl.u32 %v111, 7
    %v113 = vsub.s32 %v110, %v112
    %v114 = vrot.slane %v100, %v113
    %v115 = vcombine.low %v26, %v30
    %v116 = vcombine.high %v26, %v30
    %v118 = vunpack.c.l.s4 1983009808
    %v119 = vunpack.c.0.s8 %v118
    %v120 = vlaneseq
    %v121 = vshrl.u32 %v120, 7
    %v122 = vsub.s32 %v119, %v121
    %v123 = vrot.slane %v115, %v122
    %v125 = vunpack.c.l.s4 1983009808
    %v126 = vunpack.c.0.s8 %v125
    %v127 = vlaneseq
    %v128 = vshrl.u32 %v127, 7
    %v129 = vsub.s32 %v126, %v128
    %v130 = vrot.slane %v116, %v129
    %v131 = vcombine.low %v107, %v123
    %v132 = vcombine.high %v107, %v123
    %v134 = vunpack.c.l.s4 1934713408
    %v135 = vunpack.c.0.s8 %v134
    %v136 = vlaneseq
    %v137 = vshrl.u32 %v136, 7
    %v138 = vsub.s32 %v135, %v137
    %v139 = vrot.slane %v131, %v138
    %v141 = vunpack.c.l.s4 1934713408
    %v142 = vunpack.c.0.s8 %v141
    %v143 = vlaneseq
    %v144 = vshrl.u32 %v143, 7
    %v145 = vsub.s32 %v142, %v144
    %v146 = vrot.slane %v132, %v145
    %v147 = vcombine.low %v114, %v130
    %v148 = vcombine.high %v114, %v130
    %v150 = vunpack.c.l.s4 1934713408
    %v151 = vunpack.c.0.s8 %v150
    %v152 = vlaneseq
    %v153 = vshrl.u32 %v152, 7
    %v154 = vsub.s32 %v151, %v153
    %v155 = vrot.slane %v147, %v154
    %v157 = vunpack.c.l.s4 1934713408
    %v158 = vunpack.c.0.s8 %v157
    %v159 = vlaneseq
    %v160 = vshrl.u32 %v159, 7
    %v161 = vsub.s32 %v158, %v160
    %v162 = vrot.slane %v148, %v161
    %v163 = vcombine.high %v139, 0.0
    %v164 = vcombine.high %v146, 0.0
    %v165 = vcombine.high %v155, 0.0
    %v166 = vcombine.high %v162, 0.0
    %vm167 = vcmask 125952
    %168 = vst.msk [vmem:[#allocation5] sm:$0xf] %vm167, %v71
    %169 = vst.msk [vmem:[#allocation5 + $0x4] sm:$0xf] %vm167, %v95
    %170 = vst.msk [vmem:[#allocation5 + $0x8] sm:$0xf] %vm167, %v78
    %171 = vst.msk [vmem:[#allocation5 + $0xc] sm:$0xf] %vm167, %v96
    %172 = vst.msk [vmem:[#allocation5 + $0x10] sm:$0xf] %vm167, %v87
    %173 = vst.msk [vmem:[#allocation5 + $0x14] sm:$0xf] %vm167, %v97
    %174 = vst.msk [vmem:[#allocation5 + $0x18] sm:$0xf] %vm167, %v94
    %175 = vst.msk [vmem:[#allocation5 + $0x1c] sm:$0xf] %vm167, %v98
    %176 = vst.msk [vmem:[#allocation5 + $0x20] sm:$0xf] %vm167, %v139
    %177 = vst.msk [vmem:[#allocation5 + $0x24] sm:$0xf] %vm167, %v163
    %178 = vst.msk [vmem:[#allocation5 + $0x28] sm:$0xf] %vm167, %v146
    %179 = vst.msk [vmem:[#allocation5 + $0x2c] sm:$0xf] %vm167, %v164
    %180 = vst.msk [vmem:[#allocation5 + $0x30] sm:$0xf] %vm167, %v155
    %181 = vst.msk [vmem:[#allocation5 + $0x34] sm:$0xf] %vm167, %v165
    %182 = vst.msk [vmem:[#allocation5 + $0x38] sm:$0xf] %vm167, %v162
    %183 = vst.msk [vmem:[#allocation5 + $0x3c] sm:$0xf] %vm167, %v166
    %s184 = scalar_lea.vmem [#allocation2], 64
    %v185 = vld [vmem:[%s184] sm:$0xff]
    %v186 = vld [vmem:[%s184 + $0x8] sm:$0xff]
    %v187 = vld [vmem:[%s184 + $0x10] sm:$0xff]
    %v188 = vld [vmem:[%s184 + $0x18] sm:$0xff]
    %v189 = vld [vmem:[%s184 + $0x20] sm:$0xff]
    %v190 = vld [vmem:[%s184 + $0x28] sm:$0xff]
    %v191 = vld [vmem:[%s184 + $0x30] sm:$0xff]
    %v192 = vld [vmem:[%s184 + $0x38] sm:$0xff]
    %v193 = vcombine.low %v185, %v189
    %v194 = vcombine.high %v185, %v189
    %v196 = vunpack.c.l.s4 1983009808
    %v197 = vunpack.c.0.s8 %v196
    %v198 = vlaneseq
    %v199 = vshrl.u32 %v198, 7
    %v200 = vsub.s32 %v197, %v199
    %v201 = vrot.slane %v193, %v200
    %v203 = vunpack.c.l.s4 1983009808
    %v204 = vunpack.c.0.s8 %v203
    %v205 = vlaneseq
    %v206 = vshrl.u32 %v205, 7
    %v207 = vsub.s32 %v204, %v206
    %v208 = vrot.slane %v194, %v207
    %v209 = vcombine.low %v187, %v191
    %v210 = vcombine.high %v187, %v191
    %v212 = vunpack.c.l.s4 1983009808
    %v213 = vunpack.c.0.s8 %v212
    %v214 = vlaneseq
    %v215 = vshrl.u32 %v214, 7
    %v216 = vsub.s32 %v213, %v215
    %v217 = vrot.slane %v209, %v216
    %v219 = vunpack.c.l.s4 1983009808
    %v220 = vunpack.c.0.s8 %v219
    %v221 = vlaneseq
    %v222 = vshrl.u32 %v221, 7
    %v223 = vsub.s32 %v220, %v222
    %v224 = vrot.slane %v210, %v223
    %v225 = vcombine.low %v201, %v217
    %v226 = vcombine.high %v201, %v217
    %v228 = vunpack.c.l.s4 1934713408
    %v229 = vunpack.c.0.s8 %v228
    %v230 = vlaneseq
    %v231 = vshrl.u32 %v230, 7
    %v232 = vsub.s32 %v229, %v231
    %v233 = vrot.slane %v225, %v232
    %v235 = vunpack.c.l.s4 1934713408
    %v236 = vunpack.c.0.s8 %v235
    %v237 = vlaneseq
    %v238 = vshrl.u32 %v237, 7
    %v239 = vsub.s32 %v236, %v238
    %v240 = vrot.slane %v226, %v239
    %v241 = vcombine.low %v208, %v224
    %v242 = vcombine.high %v208, %v224
    %v244 = vunpack.c.l.s4 1934713408
    %v245 = vunpack.c.0.s8 %v244
    %v246 = vlaneseq
    %v247 = vshrl.u32 %v246, 7
    %v248 = vsub.s32 %v245, %v247
    %v249 = vrot.slane %v241, %v248
    %v251 = vunpack.c.l.s4 1934713408
    %v252 = vunpack.c.0.s8 %v251
    %v253 = vlaneseq
    %v254 = vshrl.u32 %v253, 7
    %v255 = vsub.s32 %v252, %v254
    %v256 = vrot.slane %v242, %v255
    %v257 = vcombine.high %v233, 0.0
    %v258 = vcombine.high %v240, 0.0
    %v259 = vcombine.high %v249, 0.0
    %v260 = vcombine.high %v256, 0.0
    %v261 = vcombine.low %v186, %v190
    %v262 = vcombine.high %v186, %v190
    %v264 = vunpack.c.l.s4 1983009808
    %v265 = vunpack.c.0.s8 %v264
    %v266 = vlaneseq
    %v267 = vshrl.u32 %v266, 7
    %v268 = vsub.s32 %v265, %v267
    %v269 = vrot.slane %v261, %v268
    %v271 = vunpack.c.l.s4 1983009808
    %v272 = vunpack.c.0.s8 %v271
    %v273 = vlaneseq
    %v274 = vshrl.u32 %v273, 7
    %v275 = vsub.s32 %v272, %v274
    %v276 = vrot.slane %v262, %v275
    %v277 = vcombine.low %v188, %v192
    %v278 = vcombine.high %v188, %v192
    %v280 = vunpack.c.l.s4 1983009808
    %v281 = vunpack.c.0.s8 %v280
    %v282 = vlaneseq
    %v283 = vshrl.u32 %v282, 7
    %v284 = vsub.s32 %v281, %v283
    %v285 = vrot.slane %v277, %v284
    %v287 = vunpack.c.l.s4 1983009808
    %v288 = vunpack.c.0.s8 %v287
    %v289 = vlaneseq
    %v290 = vshrl.u32 %v289, 7
    %v291 = vsub.s32 %v288, %v290
    %v292 = vrot.slane %v278, %v291
    %v293 = vcombine.low %v269, %v285
    %v294 = vcombine.high %v269, %v285
    %v296 = vunpack.c.l.s4 1934713408
    %v297 = vunpack.c.0.s8 %v296
    %v298 = vlaneseq
    %v299 = vshrl.u32 %v298, 7
    %v300 = vsub.s32 %v297, %v299
    %v301 = vrot.slane %v293, %v300
    %v303 = vunpack.c.l.s4 1934713408
    %v304 = vunpack.c.0.s8 %v303
    %v305 = vlaneseq
    %v306 = vshrl.u32 %v305, 7
    %v307 = vsub.s32 %v304, %v306
    %v308 = vrot.slane %v294, %v307
    %v309 = vcombine.low %v276, %v292
    %v310 = vcombine.high %v276, %v292
    %v312 = vunpack.c.l.s4 1934713408
    %v313 = vunpack.c.0.s8 %v312
    %v314 = vlaneseq
    %v315 = vshrl.u32 %v314, 7
    %v316 = vsub.s32 %v313, %v315
    %v317 = vrot.slane %v309, %v316
    %v319 = vunpack.c.l.s4 1934713408
    %v320 = vunpack.c.0.s8 %v319
    %v321 = vlaneseq
    %v322 = vshrl.u32 %v321, 7
    %v323 = vsub.s32 %v320, %v322
    %v324 = vrot.slane %v310, %v323
    %v325 = vcombine.high %v301, 0.0
    %v326 = vcombine.high %v308, 0.0
    %v327 = vcombine.high %v317, 0.0
    %v328 = vcombine.high %v324, 0.0
    %s329 = scalar_lea.vmem [#allocation5], 64
    %330 = vst.msk [vmem:[%s329] sm:$0xf] %vm167, %v233
    %331 = vst.msk [vmem:[%s329 + $0x4] sm:$0xf] %vm167, %v257
    %332 = vst.msk [vmem:[%s329 + $0x8] sm:$0xf] %vm167, %v240
    %333 = vst.msk [vmem:[%s329 + $0xc] sm:$0xf] %vm167, %v258
    %334 = vst.msk [vmem:[%s329 + $0x10] sm:$0xf] %vm167, %v249
    %335 = vst.msk [vmem:[%s329 + $0x14] sm:$0xf] %vm167, %v259
    %336 = vst.msk [vmem:[%s329 + $0x18] sm:$0xf] %vm167, %v256
    %337 = vst.msk [vmem:[%s329 + $0x1c] sm:$0xf] %vm167, %v260
    %338 = vst.msk [vmem:[%s329 + $0x20] sm:$0xf] %vm167, %v301
    %339 = vst.msk [vmem:[%s329 + $0x24] sm:$0xf] %vm167, %v325
    %340 = vst.msk [vmem:[%s329 + $0x28] sm:$0xf] %vm167, %v308
    %341 = vst.msk [vmem:[%s329 + $0x2c] sm:$0xf] %vm167, %v326
    %342 = vst.msk [vmem:[%s329 + $0x30] sm:$0xf] %vm167, %v317
    %343 = vst.msk [vmem:[%s329 + $0x34] sm:$0xf] %vm167, %v327
    %344 = vst.msk [vmem:[%s329 + $0x38] sm:$0xf] %vm167, %v324
    %345 = vst.msk [vmem:[%s329 + $0x3c] sm:$0xf] %vm167, %v328
    // Predicated region
    $region10: #{tpu_custom_call.1} parent=1 // pred_check
      _
    $region11: #{tpu_custom_call.1} parent=1 // pred_check_branch
      %347 = sbr.rel (0) target = $region13
    $region12: #{tpu_custom_call.1} parent=1 // pred_region
      %s349 = ssub.s32 2048, 2048
      %350 = vsyncadd [#allocation4], %s349
      %s351 = sshll.u32 [#allocation5], 4
      %s352 = int_to_ptr.vmem [resolvable:$true] %s351
      %357 = dma.vmem_to_hbm [thread:$0]  %s352, 2048, %s1, [#allocation4], 64, 64, 4
    $region13: #{tpu_custom_call.1} parent=1 // pred_fallthru
      _
    // Predicated region
    $region14: #{tpu_custom_call.1} parent=1 // pred_check
      _
    $region15: #{tpu_custom_call.1} parent=1 // pred_check_branch
      %359 = sbr.rel (0) target = $region17
    $region16: #{tpu_custom_call.1} parent=1 // pred_region
      %360 = dma.done [#allocation4], 2048
    $region17: #{tpu_custom_call.1} parent=1 // pred_fallthru
      _
    %361 = vsyncpa [#allocation3], 1
    %362 = vsyncpa [#allocation4], 1

</llo_original>
